<compile_context>
chip_gen: v5e
topology: v5e:2x2
jax: 0.10.0
libtpu: 0.0.40
codegen_flags: <defaults>
</compile_context>

<pallas_src>
import functools

import jax
import jax.numpy as jnp
from jax.experimental import pallas as pl
from jax.experimental.pallas import tpu as pltpu


def _dice_kernel(score_ref, label_ref, stats_ref,
                 inter_acc, y_acc, z_acc, *, apply_softmax):
    """One grid step = one (batch, core-split, spatial-tile) block.

    score_ref: (C, tile_rows, 128) input dtype  raw predictions (logits if softmax)
    label_ref: (tile_rows, 128)    label dtype  class indices
    stats_ref: (C, 3)              f32          per-(batch,split) [intersect, y_sum, z_sum]
    *_acc:     (C, 128)            f32          VMEM accumulators (persist over tiles)
    """
    j = pl.program_id(2)
    nj = pl.num_programs(2)
    c = score_ref.shape[0]

    @pl.when(j == 0)
    def _():
        inter_acc[...] = jnp.zeros_like(inter_acc)
        y_acc[...] = jnp.zeros_like(y_acc)
        z_acc[...] = jnp.zeros_like(z_acc)

    s = score_ref[...].astype(jnp.float32)            # (C, tr, 128)
    lab = label_ref[...].astype(jnp.int32)            # (tr, 128) integer compare

    if apply_softmax:
        # Softmax over the class axis: with classes on separate vreg slabs the
        # max/sum are cross-vreg VPU ops; exp rides the EUP slot; the divide is
        # replaced by one narrow reciprocal + a full-width multiply.
        s = s - jnp.max(s, axis=0, keepdims=True)
        e = jnp.exp(s)
        denom = jnp.sum(e, axis=0, keepdims=True)     # (1, tr, 128)
        s = e * pl.reciprocal(denom, approx=False)

    cls = jax.lax.broadcasted_iota(jnp.int32, (c, 1, 128), 0)
    onehot = (lab[None, :, :] == cls).astype(jnp.float32)   # (C, tr, 128)

    # Reduce only the rows (sublane) axis per tile; keep lanes in the
    # accumulators and defer the lane-axis reduce to the epilogue.
    inter_acc[...] += jnp.sum(s * onehot, axis=1)     # (C, 128)
    y_acc[...] += jnp.sum(onehot, axis=1)             # onehot^2 == onehot
    z_acc[...] += jnp.sum(s * s, axis=1)

    @pl.when(j == nj - 1)
    def _():
        stats_ref[:, 0:1] = jnp.sum(inter_acc[...], axis=1, keepdims=True)
        stats_ref[:, 1:2] = jnp.sum(y_acc[...], axis=1, keepdims=True)
        stats_ref[:, 2:3] = jnp.sum(z_acc[...], axis=1, keepdims=True)


def _pick_tile_rows(c, score_itemsize, label_itemsize):
    """Largest multiple-of-8 row tile (<=128 rows == 16K cols) fitting a ~24 MiB
    budget that accounts for double-buffered inputs AND ~6 live f32 temporaries."""
    budget = 24 * 1024 * 1024
    bytes_per_row = 128 * (
        2 * c * score_itemsize      # double-buffered score block
        + 2 * label_itemsize        # double-buffered label block
        + 6 * c * 4                 # live f32 temporaries (s, e, onehot, products, ...)
    )
    t = budget // bytes_per_row
    t = max(8, min(128, (t // 8) * 8))
    return int(t)


@functools.partial(jax.jit, static_argnames=("n_classes", "softmax"))
def dice_loss(inputs, target, weight=None, *, n_classes, softmax=False):
    """Pallas DiceLoss forward.

    inputs: (B, C, H, W) predictions (NCHW, any float dtype)
    target: (B, 1, H, W) class indices (any numeric dtype; integer preferred)
    weight: optional (C,) per-class weights; default all-ones.
    """
    b, c, h, w = inputs.shape
    assert c == n_classes, "predict & target shape do not match"
    hw = h * w

    r0 = pl.cdiv(hw, 128)
    max_rows = _pick_tile_rows(c, inputs.dtype.itemsize, target.dtype.itemsize)
    if r0 <= max_rows:
        tile_rows, n_tiles = r0, 1
    else:
        tile_rows = next((t for t in range(max_rows, 7, -8) if r0 % t == 0), None)
        if tile_rows is None:
            tile_rows = max_rows
        n_tiles = pl.cdiv(r0, tile_rows)
    r = tile_rows * n_tiles
    pad = r * 128 - hw

    # Free, contiguous reshapes; padding (extra HBM pass) only when H*W does
    # not tile evenly.  Pad labels with n_classes (one-hot all-zero) and score
    # with 0; the only residual (softmax-of-zero columns in z_sum) is removed
    # analytically in the epilogue.
    score = inputs.reshape(b, c, hw)
    labels = target.reshape(b, hw)
    if pad:
        score = jnp.pad(score, ((0, 0), (0, 0), (0, pad)))
        labels = jnp.pad(labels, ((0, 0), (0, pad)), constant_values=n_classes)
    score = score.reshape(b, c, r, 128)
    labels = labels.reshape(b, r, 128)

    # 2-way spatial split so both v7x TensorCores get work even when B == 1.
    split = 2 if (n_tiles >= 2 and n_tiles % 2 == 0) else 1
    inner = n_tiles // split

    kernel = functools.partial(_dice_kernel, apply_softmax=softmax)

    stats = pl.pallas_call(
        kernel,
        out_shape=jax.ShapeDtypeStruct((b, split, c, 3), jnp.float32),
        grid_spec=pltpu.PrefetchScalarGridSpec(
            num_scalar_prefetch=0,
            grid=(b, split, inner),
            in_specs=[
                pl.BlockSpec((None, c, tile_rows, 128),
                             lambda bi, p, j: (bi, 0, p * inner + j, 0)),
                pl.BlockSpec((None, tile_rows, 128),
                             lambda bi, p, j: (bi, p * inner + j, 0)),
            ],
            out_specs=pl.BlockSpec((None, None, c, 3),
                                   lambda bi, p, j: (bi, p, 0, 0)),
            scratch_shapes=[
                pltpu.VMEM((c, 128), jnp.float32),   # intersect
                pltpu.VMEM((c, 128), jnp.float32),   # y_sum
                pltpu.VMEM((c, 128), jnp.float32),   # z_sum
            ],
        ),
        compiler_params=pltpu.CompilerParams(
            dimension_semantics=("parallel", "parallel", "arbitrary"),
            vmem_limit_bytes=32 * 1024 * 1024),
    )(score, labels)

    # Tiny plain-JAX epilogue: combine partials -> weighted dice loss.
    if weight is None:
        weight = jnp.ones((c,), jnp.float32)
    weight = jnp.asarray(weight, jnp.float32).reshape(c)

    inter = jnp.sum(stats[..., 0], axis=(0, 1))      # (C,)
    y_sum = jnp.sum(stats[..., 1], axis=(0, 1))
    z_sum = jnp.sum(stats[..., 2], axis=(0, 1))
    if softmax and pad:
        # Padded columns softmax to 1/C per class -> each contributes (1/C)^2
        # to every class's z_sum (intersect / y_sum are untouched).
        z_sum = z_sum - (b * pad) / float(c * c)
    smooth = 1e-5
    dice = 1.0 - (2.0 * inter + smooth) / (z_sum + y_sum + smooth)
    return jnp.sum(dice * weight) / n_classes


def _dice_loss_ref(inputs, target, n_classes, softmax=False):
    """Pure-JAX reference matching the PyTorch module semantics."""
    if softmax:
        inputs = jax.nn.softmax(inputs, axis=1)
    onehot = jax.nn.one_hot(target[:, 0].astype(jnp.int32), n_classes,
                            axis=1, dtype=jnp.float32)   # (B, C, H, W)
    smooth = 1e-5
    loss = 0.0
    for i in range(n_classes):
        s = inputs[:, i].astype(jnp.float32)
        t = onehot[:, i]
        inter = jnp.sum(s * t)
        y = jnp.sum(t * t)
        z = jnp.sum(s * s)
        loss += 1.0 - (2.0 * inter + smooth) / (z + y + smooth)
    return loss / n_classes


if __name__ == "__main__":
    key = jax.random.PRNGKey(0)
    k1, k2, k3, k4 = jax.random.split(key, 4)

    # Case 1: softmax path, H*W multiple of 128 (no padding).
    B, C, H, W = 2, 4, 16, 16
    logits = jax.random.normal(k1, (B, C, H, W), dtype=jnp.float32)
    target = jax.random.randint(k2, (B, 1, H, W), 0, C).astype(jnp.float32)

    loss = jax.block_until_ready(dice_loss(logits, target, n_classes=C, softmax=True))
    ref = _dice_loss_ref(logits, target, C, softmax=True)
    assert jnp.allclose(loss, ref, rtol=1e-4, atol=1e-5), (loss, ref)

    # Case 2: raw (no-softmax) path.
    loss2 = jax.block_until_ready(dice_loss(logits, target, n_classes=C, softmax=False))
    ref2 = _dice_loss_ref(logits, target, C, softmax=False)
    assert jnp.allclose(loss2, ref2, rtol=1e-4, atol=1e-5), (loss2, ref2)

    # Case 3: H*W not a multiple of 128 -> padded path with z_sum correction.
    H3, W3 = 10, 10
    logits3 = jax.random.normal(k3, (B, C, H3, W3), dtype=jnp.float32)
    target3 = jax.random.randint(k4, (B, 1, H3, W3), 0, C).astype(jnp.float32)
    loss3 = jax.block_until_ready(dice_loss(logits3, target3, n_classes=C, softmax=True))
    ref3 = _dice_loss_ref(logits3, target3, C, softmax=True)
    assert jnp.allclose(loss3, ref3, rtol=1e-4, atol=1e-5), (loss3, ref3)

    print("KERNEL_OK")
</pallas_src>

<mosaic_0001>
module attributes {stable_mosaic.version = 11 : i64} {
  func.func @_dice_kernel(%arg0: i32, %arg1: i32, %arg2: i32, %arg3: memref<1x4x2x128xf32, #tpu.memory_space<vmem>>, %arg4: memref<1x2x128xf32, #tpu.memory_space<vmem>>, %arg5: memref<1x1x4x3xf32, #tpu.memory_space<vmem>>, %arg6: memref<4x128xf32, #tpu.memory_space<vmem>>, %arg7: memref<4x128xf32, #tpu.memory_space<vmem>>, %arg8: memref<4x128xf32, #tpu.memory_space<vmem>>) attributes {dimension_semantics = [#tpu.dimension_semantics<parallel>, #tpu.dimension_semantics<parallel>, #tpu.dimension_semantics<arbitrary>], iteration_bounds = array<i64: 2, 1, 1>, scalar_prefetch = 0 : i64, scratch_operands = 3 : i64, tpu.core_type = #tpu.core_type<tc>, window_params = [{transform_indices = @transform_0, window_bounds = array<i64: 1, 4, 2, 128>}, {transform_indices = @transform_1, window_bounds = array<i64: 1, 2, 128>}, {transform_indices = @transform_2, window_bounds = array<i64: 1, 1, 4, 3>}]} {
    %c0_i32 = arith.constant 0 : i32
    %0 = arith.cmpi eq, %arg2, %c0_i32 : i32
    %1 = arith.extui %0 : i1 to i32
    %c0_i32_0 = arith.constant 0 : i32
    %2 = arith.cmpi ne, %1, %c0_i32_0 : i32
    scf.if %2 {
      %cst_25 = arith.constant 0.000000e+00 : f32
      %42 = vector.broadcast %cst_25 : f32 to vector<4x128xf32>
      %c0_26 = arith.constant 0 : index
      %c0_27 = arith.constant 0 : index
      %43 = vector.load %arg6[%c0_26, %c0_27] : memref<4x128xf32, #tpu.memory_space<vmem>>, vector<4x128xf32>
      tpu.vector_store %arg6[%c0_26, %c0_27], %42 {strides = array<i32>} : memref<4x128xf32, #tpu.memory_space<vmem>>, vector<4x128xf32>,
      %cst_28 = arith.constant 0.000000e+00 : f32
      %44 = vector.broadcast %cst_28 : f32 to vector<4x128xf32>
      %c0_29 = arith.constant 0 : index
      %c0_30 = arith.constant 0 : index
      %45 = vector.load %arg7[%c0_29, %c0_30] : memref<4x128xf32, #tpu.memory_space<vmem>>, vector<4x128xf32>
      tpu.vector_store %arg7[%c0_29, %c0_30], %44 {strides = array<i32>} : memref<4x128xf32, #tpu.memory_space<vmem>>, vector<4x128xf32>,
      %cst_31 = arith.constant 0.000000e+00 : f32
      %46 = vector.broadcast %cst_31 : f32 to vector<4x128xf32>
      %c0_32 = arith.constant 0 : index
      %c0_33 = arith.constant 0 : index
      %47 = vector.load %arg8[%c0_32, %c0_33] : memref<4x128xf32, #tpu.memory_space<vmem>>, vector<4x128xf32>
      tpu.vector_store %arg8[%c0_32, %c0_33], %46 {strides = array<i32>} : memref<4x128xf32, #tpu.memory_space<vmem>>, vector<4x128xf32>,
    } else {
    }
    %c0 = arith.constant 0 : index
    %c0_1 = arith.constant 0 : index
    %c0_2 = arith.constant 0 : index
    %c0_3 = arith.constant 0 : index
    %3 = vector.load %arg3[%c0, %c0_1, %c0_2, %c0_3] : memref<1x4x2x128xf32, #tpu.memory_space<vmem>>, vector<1x4x2x128xf32>
    %4 = vector.shape_cast %3 : vector<1x4x2x128xf32> to vector<4x2x128xf32>
    %c0_4 = arith.constant 0 : index
    %c0_5 = arith.constant 0 : index
    %c0_6 = arith.constant 0 : index
    %5 = vector.load %arg4[%c0_4, %c0_5, %c0_6] : memref<1x2x128xf32, #tpu.memory_space<vmem>>, vector<1x2x128xf32>
    %6 = vector.shape_cast %5 : vector<1x2x128xf32> to vector<2x128xf32>
    %7 = arith.fptosi %6 : vector<2x128xf32> to vector<2x128xi32>
    %cst = arith.constant dense<0xFF800000> : vector<2x128xf32>
    %8 = vector.multi_reduction <maximumf>, %4, %cst [0] : vector<4x2x128xf32> to vector<2x128xf32>
    %9 = vector.shape_cast %8 : vector<2x128xf32> to vector<1x2x128xf32>
    %10 = vector.broadcast %9 : vector<1x2x128xf32> to vector<4x2x128xf32>
    %11 = arith.subf %4, %10 : vector<4x2x128xf32>
    %12 = math.exp %11 : vector<4x2x128xf32>
    %cst_7 = arith.constant dense<0.000000e+00> : vector<2x128xf32>
    %13 = vector.multi_reduction <add>, %12, %cst_7 [0] : vector<4x2x128xf32> to vector<2x128xf32>
    %14 = vector.shape_cast %13 : vector<2x128xf32> to vector<1x2x128xf32>
    %15 = tpu.reciprocal %14 : vector<1x2x128xf32> -> vector<1x2x128xf32>
    %16 = vector.broadcast %15 : vector<1x2x128xf32> to vector<4x2x128xf32>
    %17 = arith.mulf %12, %16 : vector<4x2x128xf32>
    %18 = tpu.iota {dimensions = array<i32: 0>} : vector<4x1x128xi32>
    %19 = vector.shape_cast %7 : vector<2x128xi32> to vector<1x2x128xi32>
    %20 = vector.broadcast %19 : vector<1x2x128xi32> to vector<4x2x128xi32>
    %21 = vector.broadcast %18 : vector<4x1x128xi32> to vector<4x2x128xi32>
    %22 = arith.cmpi eq, %20, %21 : vector<4x2x128xi32>
    %23 = arith.extui %22 : vector<4x2x128xi1> to vector<4x2x128xi32>
    %24 = arith.sitofp %23 : vector<4x2x128xi32> to vector<4x2x128xf32>
    %c0_8 = arith.constant 0 : index
    %c0_9 = arith.constant 0 : index
    %25 = vector.load %arg6[%c0_8, %c0_9] : memref<4x128xf32, #tpu.memory_space<vmem>>, vector<4x128xf32>
    %26 = arith.mulf %17, %24 : vector<4x2x128xf32>
    %cst_10 = arith.constant dense<0.000000e+00> : vector<4x128xf32>
    %27 = vector.multi_reduction <add>, %26, %cst_10 [1] : vector<4x2x128xf32> to vector<4x128xf32>
    %28 = arith.addf %25, %27 : vector<4x128xf32>
    %c0_11 = arith.constant 0 : index
    %c0_12 = arith.constant 0 : index
    %29 = vector.load %arg6[%c0_11, %c0_12] : memref<4x128xf32, #tpu.memory_space<vmem>>, vector<4x128xf32>
    tpu.vector_store %arg6[%c0_11, %c0_12], %28 {strides = array<i32>} : memref<4x128xf32, #tpu.memory_space<vmem>>, vector<4x128xf32>,
    %c0_13 = arith.constant 0 : index
    %c0_14 = arith.constant 0 : index
    %30 = vector.load %arg7[%c0_13, %c0_14] : memref<4x128xf32, #tpu.memory_space<vmem>>, vector<4x128xf32>
    %cst_15 = arith.constant dense<0.000000e+00> : vector<4x128xf32>
    %31 = vector.multi_reduction <add>, %24, %cst_15 [1] : vector<4x2x128xf32> to vector<4x128xf32>
    %32 = arith.addf %30, %31 : vector<4x128xf32>
    %c0_16 = arith.constant 0 : index
    %c0_17 = arith.constant 0 : index
    %33 = vector.load %arg7[%c0_16, %c0_17] : memref<4x128xf32, #tpu.memory_space<vmem>>, vector<4x128xf32>
    tpu.vector_store %arg7[%c0_16, %c0_17], %32 {strides = array<i32>} : memref<4x128xf32, #tpu.memory_space<vmem>>, vector<4x128xf32>,
    %c0_18 = arith.constant 0 : index
    %c0_19 = arith.constant 0 : index
    %34 = vector.load %arg8[%c0_18, %c0_19] : memref<4x128xf32, #tpu.memory_space<vmem>>, vector<4x128xf32>
    %35 = arith.mulf %17, %17 : vector<4x2x128xf32>
    %cst_20 = arith.constant dense<0.000000e+00> : vector<4x128xf32>
    %36 = vector.multi_reduction <add>, %35, %cst_20 [1] : vector<4x2x128xf32> to vector<4x128xf32>
    %37 = arith.addf %34, %36 : vector<4x128xf32>
    %c0_21 = arith.constant 0 : index
    %c0_22 = arith.constant 0 : index
    %38 = vector.load %arg8[%c0_21, %c0_22] : memref<4x128xf32, #tpu.memory_space<vmem>>, vector<4x128xf32>
    tpu.vector_store %arg8[%c0_21, %c0_22], %37 {strides = array<i32>} : memref<4x128xf32, #tpu.memory_space<vmem>>, vector<4x128xf32>,
    %c0_i32_23 = arith.constant 0 : i32
    %39 = arith.cmpi eq, %arg2, %c0_i32_23 : i32
    %40 = arith.extui %39 : i1 to i32
    %c0_i32_24 = arith.constant 0 : i32
    %41 = arith.cmpi ne, %40, %c0_i32_24 : i32
    scf.if %41 {
      %c0_25 = arith.constant 0 : index
      %c0_26 = arith.constant 0 : index
      %42 = vector.load %arg6[%c0_25, %c0_26] : memref<4x128xf32, #tpu.memory_space<vmem>>, vector<4x128xf32>
      %cst_27 = arith.constant dense<0.000000e+00> : vector<4xf32>
      %43 = vector.multi_reduction <add>, %42, %cst_27 [1] : vector<4x128xf32> to vector<4xf32>
      %44 = vector.shape_cast %43 : vector<4xf32> to vector<4x1xf32>
      %c0_28 = arith.constant 0 : index
      %c0_29 = arith.constant 0 : index
      %c0_30 = arith.constant 0 : index
      %c0_31 = arith.constant 0 : index
      %45 = vector.load %arg5[%c0_28, %c0_29, %c0_30, %c0_31] : memref<1x1x4x3xf32, #tpu.memory_space<vmem>>, vector<1x1x4x1xf32>
      %46 = vector.shape_cast %45 : vector<1x1x4x1xf32> to vector<4x1xf32>
      %47 = vector.shape_cast %44 : vector<4x1xf32> to vector<1x1x4x1xf32>
      tpu.vector_store %arg5[%c0_28, %c0_29, %c0_30, %c0_31], %47 {strides = array<i32>} : memref<1x1x4x3xf32, #tpu.memory_space<vmem>>, vector<1x1x4x1xf32>,
      %c0_32 = arith.constant 0 : index
      %c0_33 = arith.constant 0 : index
      %48 = vector.load %arg7[%c0_32, %c0_33] : memref<4x128xf32, #tpu.memory_space<vmem>>, vector<4x128xf32>
      %cst_34 = arith.constant dense<0.000000e+00> : vector<4xf32>
      %49 = vector.multi_reduction <add>, %48, %cst_34 [1] : vector<4x128xf32> to vector<4xf32>
      %50 = vector.shape_cast %49 : vector<4xf32> to vector<4x1xf32>
      %c0_35 = arith.constant 0 : index
      %c0_36 = arith.constant 0 : index
      %c0_37 = arith.constant 0 : index
      %c1 = arith.constant 1 : index
      %51 = vector.load %arg5[%c0_35, %c0_36, %c0_37, %c1] : memref<1x1x4x3xf32, #tpu.memory_space<vmem>>, vector<1x1x4x1xf32>
      %52 = vector.shape_cast %51 : vector<1x1x4x1xf32> to vector<4x1xf32>
      %53 = vector.shape_cast %50 : vector<4x1xf32> to vector<1x1x4x1xf32>
      tpu.vector_store %arg5[%c0_35, %c0_36, %c0_37, %c1], %53 {strides = array<i32>} : memref<1x1x4x3xf32, #tpu.memory_space<vmem>>, vector<1x1x4x1xf32>,
      %c0_38 = arith.constant 0 : index
      %c0_39 = arith.constant 0 : index
      %54 = vector.load %arg8[%c0_38, %c0_39] : memref<4x128xf32, #tpu.memory_space<vmem>>, vector<4x128xf32>
      %cst_40 = arith.constant dense<0.000000e+00> : vector<4xf32>
      %55 = vector.multi_reduction <add>, %54, %cst_40 [1] : vector<4x128xf32> to vector<4xf32>
      %56 = vector.shape_cast %55 : vector<4xf32> to vector<4x1xf32>
      %c0_41 = arith.constant 0 : index
      %c0_42 = arith.constant 0 : index
      %c0_43 = arith.constant 0 : index
      %c2 = arith.constant 2 : index
      %57 = vector.load %arg5[%c0_41, %c0_42, %c0_43, %c2] : memref<1x1x4x3xf32, #tpu.memory_space<vmem>>, vector<1x1x4x1xf32>
      %58 = vector.shape_cast %57 : vector<1x1x4x1xf32> to vector<4x1xf32>
      %59 = vector.shape_cast %56 : vector<4x1xf32> to vector<1x1x4x1xf32>
      tpu.vector_store %arg5[%c0_41, %c0_42, %c0_43, %c2], %59 {strides = array<i32>} : memref<1x1x4x3xf32, #tpu.memory_space<vmem>>, vector<1x1x4x1xf32>,
    } else {
    }
    return
  }
  func.func @transform_0(%arg0: i32, %arg1: i32, %arg2: i32) -> (i32, i32, i32, i32) {
    %c1_i32 = arith.constant 1 : i32
    %0 = arith.muli %arg1, %c1_i32 : i32
    %1 = arith.addi %0, %arg2 : i32
    %c0_i32 = arith.constant 0 : i32
    %c0_i32_0 = arith.constant 0 : i32
    %c0_i32_1 = arith.constant 0 : i32
    return %arg0, %c0_i32, %1, %c0_i32_0 : i32, i32, i32, i32
  }
  func.func @transform_1(%arg0: i32, %arg1: i32, %arg2: i32) -> (i32, i32, i32) {
    %c1_i32 = arith.constant 1 : i32
    %0 = arith.muli %arg1, %c1_i32 : i32
    %1 = arith.addi %0, %arg2 : i32
    %c0_i32 = arith.constant 0 : i32
    %c0_i32_0 = arith.constant 0 : i32
    return %arg0, %1, %c0_i32 : i32, i32, i32
  }
  func.func @transform_2(%arg0: i32, %arg1: i32, %arg2: i32) -> (i32, i32, i32, i32) {
    %c0_i32 = arith.constant 0 : i32
    %c0_i32_0 = arith.constant 0 : i32
    %c0_i32_1 = arith.constant 0 : i32
    return %arg0, %arg1, %c0_i32, %c0_i32_0 : i32, i32, i32, i32
  }
}

</mosaic_0001>

<llo_original>
// kernel: dice_loss.1
$region0: #{dice_loss.1}
  #allocation0 [shape = 'u32[]', space=smem, size = 0x4, offset = 0x4, fixed_abs, tag = 'smem constant byte address 0x4 - core index']
  #allocation1 [shape = 'u32[72,128]{1,0:T(1,128)}', space=vmem, size = 0x9000, scoped, tag = 'internal scratch']
  #allocation2 [shape = 'f32[4,128]{1,0:T(4,128)}', space=vmem, size = 0x800, scoped, tag = 'scratch operand']
  #allocation3 [shape = 'f32[4,128]{1,0:T(4,128)}', space=vmem, size = 0x800, scoped, tag = 'scratch operand']
  #allocation4 [shape = 'f32[4,128]{1,0:T(4,128)}', space=vmem, size = 0x800, scoped, tag = 'scratch operand']
  %s0 = inlined_call_operand.vmem [shape: f32[2,4,2,128], index: 0, kind: input, shape index: {}]
  %s1 = inlined_call_operand.vmem [shape: f32[2,2,128], index: 1, kind: input, shape index: {}]
  %s2 = inlined_call_operand.vmem [shape: f32[2,1,4,3], index: 2, kind: output, shape index: {}]
  %s3 = sld [smem:[#allocation0]]
  $region49: #{dice_loss.1} parent=0
    _
  %s5 = ssub.s32 1, %s3
  %s6 = scalar_select 0, %s5, %s3
  loop: start=0, step=1, limit=4
  $region2: #{dice_loss.1} parent=0 // loop_pre_header
    _
  $region3: #{dice_loss.1} parent=0 // loop_header
    %s8 = sphi 0, %s12
    %p9 = scmp.ge.s32.totalorder %s8, 4
    %s15 = sphi 0, %s34
    %s16 = sphi 0, %s30
    %s17 = sphi 0, %s26
    %s18 = sphi 0, %s15
    %s19 = sphi 0, %s16
    %s20 = sphi 0, %s17
    %s21 = sphi 0, %s18
    %s22 = sphi 0, %s19
    %s23 = sphi 0, %s20
    %s41 = sphi 0, %s43
    %s44 = sphi 0, %s41
    %s45 = sphi 0, %s44
    %s61 = sphi 0, %s45
    %s71 = sphi 0, %s73
    %s74 = sphi 0, %s71
    %s75 = sphi 0, %s74
    %s91 = sphi 0, %s75
    %s99 = sphi 0, %s101
    %s102 = sphi 0, %s99
    %s103 = sphi 0, %s102
    %s119 = sphi 0, %s103
  $region4: #{dice_loss.1} parent=0 // loop_header_branch
    %11 = sbr.rel (%p9) target = $region8
  $region5: #{dice_loss.1} parent=0 // loop_body
    %s13 = ssub.s32 %s8, 1
    %s14 = ssub.s32 %s8, 2
    %s24 = sadd.s32 1, %s17
    %p25 = scmp.ge.s32.totalorder %s24, 1
    %s26 = scalar_select %p25, 0, %s24
    %s27 = sadd.s32 1, %s16
    %s28 = scalar_select %p25, %s27, %s16
    %p29 = scmp.ge.s32.totalorder %s28, 1
    %s30 = scalar_select %p29, 0, %s28
    %s31 = sadd.s32 1, %s15
    %s32 = scalar_select %p29, %s31, %s15
    %p33 = scmp.ge.s32.totalorder %s32, 2
    %s34 = scalar_select %p33, 0, %s32
    %s35 = sadd.s32 %s16, %s17
    %s36 = sadd.s32 %s30, %s26
    %s37 = ssub.s32 %s15, %s34
    %s38 = ssub.s32 %s35, %s36
    %s39 = sor.u32 %s37, %s38
    %p40 = scmp.eq.s32.totalorder %s39, 0
    %s42 = sadd.s32 %s41, 1
    %s43 = scalar_select %p40, %s41, %s42
    %p46 = pneg %p40
    %p47 = scmp.eq.s32.totalorder %s8, 1
    %p48 = por %p46, %p47
    %p49 = scmp.ne.s32.totalorder %s41, %s44
    %p50 = scmp.eq.s32.totalorder %s8, 0
    %p51 = por %p49, %p50
    %p52 = scmp.ne.s32.totalorder %s41, %s44
    %p53 = scmp.eq.s32.totalorder %s13, 1
    %p54 = por %p52, %p53
    %p55 = scmp.ne.s32.totalorder %s44, %s45
    %p56 = scmp.eq.s32.totalorder %s13, 0
    %p57 = por %p55, %p56
    %p58 = scmp.ne.s32.totalorder %s44, %s45
    %p59 = scmp.eq.s32.totalorder %s14, 1
    %p60 = por %p58, %p59
    %p62 = scmp.ne.s32.totalorder %s45, %s61
    %p63 = scmp.eq.s32.totalorder %s14, 0
    %p64 = por %p62, %p63
    %s65 = sadd.s32 %s16, %s17
    %s66 = sadd.s32 %s30, %s26
    %s67 = ssub.s32 %s15, %s34
    %s68 = ssub.s32 %s65, %s66
    %s69 = sor.u32 %s67, %s68
    %p70 = scmp.eq.s32.totalorder %s69, 0
    %s72 = sadd.s32 %s71, 1
    %s73 = scalar_select %p70, %s71, %s72
    %p76 = pneg %p70
    %p77 = scmp.eq.s32.totalorder %s8, 1
    %p78 = por %p76, %p77
    %p79 = scmp.ne.s32.totalorder %s71, %s74
    %p80 = scmp.eq.s32.totalorder %s8, 0
    %p81 = por %p79, %p80
    %p82 = scmp.ne.s32.totalorder %s71, %s74
    %p83 = scmp.eq.s32.totalorder %s13, 1
    %p84 = por %p82, %p83
    %p85 = scmp.ne.s32.totalorder %s74, %s75
    %p86 = scmp.eq.s32.totalorder %s13, 0
    %p87 = por %p85, %p86
    %p88 = scmp.ne.s32.totalorder %s74, %s75
    %p89 = scmp.eq.s32.totalorder %s14, 1
    %p90 = por %p88, %p89
    %p92 = scmp.ne.s32.totalorder %s75, %s91
    %p93 = scmp.eq.s32.totalorder %s14, 0
    %p94 = por %p92, %p93
    %s95 = ssub.s32 %s15, %s34
    %s96 = ssub.s32 %s16, %s30
    %s97 = sor.u32 %s95, %s96
    %p98 = scmp.eq.s32.totalorder %s97, 0
    %s100 = sadd.s32 %s99, 1
    %s101 = scalar_select %p98, %s99, %s100
    %p104 = pneg %p98
    %p105 = scmp.eq.s32.totalorder %s8, 1
    %p106 = por %p104, %p105
    %p107 = scmp.ne.s32.totalorder %s99, %s102
    %p108 = scmp.eq.s32.totalorder %s8, 0
    %p109 = por %p107, %p108
    %p110 = scmp.ne.s32.totalorder %s99, %s102
    %p111 = scmp.eq.s32.totalorder %s13, 1
    %p112 = por %p110, %p111
    %p113 = scmp.ne.s32.totalorder %s102, %s103
    %p114 = scmp.eq.s32.totalorder %s13, 0
    %p115 = por %p113, %p114
    %p116 = scmp.ne.s32.totalorder %s102, %s103
    %p117 = scmp.eq.s32.totalorder %s14, 1
    %p118 = por %p116, %p117
    %p120 = scmp.ne.s32.totalorder %s103, %s119
    %p121 = scmp.eq.s32.totalorder %s14, 0
    %p122 = por %p120, %p121
    %p123 = scmp.le.s32.totalorder 1, %s8
    %p124 = scmp.lt.s32.totalorder %s8, 3
    %p125 = pnand %p123, %p124
    %p126 = pneg %p125
    // Predicated region
    $region9: #{dice_loss.1} parent=5 // pred_check
      _
    $region10: #{dice_loss.1} parent=5 // pred_check_branch
      %128 = sbr.rel (%p125) target = $region12
    $region11: #{dice_loss.1} parent=5 // pred_region
      %s129 = ssub.s32 %s8, 1
    $region12: #{dice_loss.1} parent=5 // pred_fallthru
      _
    %p130 = scmp.lt.s32.totalorder %s8, 2
    // Predicated region
    $region13: #{dice_loss.1} parent=5 // pred_check
      %p131 = pneg %p130
    $region14: #{dice_loss.1} parent=5 // pred_check_branch
      %133 = sbr.rel (%p131) target = $region16
    $region15: #{dice_loss.1} parent=5 // pred_region
      // Predicated region
      $region17: #{dice_loss.1} parent=15 // pred_check
        %p134 = pneg %p51
      $region18: #{dice_loss.1} parent=15 // pred_check_branch
        %136 = sbr.rel (%p134) target = $region20
      $region19: #{dice_loss.1} parent=15 // pred_region
        %s137 = sadd.s32 %s16, %s17
        %p138 = scmp.lt.s32.totalorder %s15, 1
        %s139 = scalar_select %p138, %s15, 1
        %p140 = scmp.lt.s32.totalorder %s137, 0
        %s141 = scalar_select %p140, %s137, 0
        %s142 = smul.addr %s139, 4
        %s143 = sadd.s32 %s141, %s142
        %s144 = smul.addr %s143, 2
        %s145 = scalar_lea.vmem %s0, %s144
        %s146 = sadd.s32 %s16, %s17
      $region20: #{dice_loss.1} parent=15 // pred_fallthru
        _
      // Predicated region
      $region21: #{dice_loss.1} parent=15 // pred_check
        %p147 = pneg %p81
      $region22: #{dice_loss.1} parent=15 // pred_check_branch
        %149 = sbr.rel (%p147) target = $region24
      $region23: #{dice_loss.1} parent=15 // pred_region
        %s150 = sadd.s32 %s16, %s17
        %p151 = scmp.lt.s32.totalorder %s15, 1
        %s152 = scalar_select %p151, %s15, 1
        %p153 = scmp.lt.s32.totalorder %s150, 0
        %s154 = scalar_select %p153, %s150, 0
        %s155 = sadd.s32 %s154, %s152
        %s156 = smul.addr %s155, 2
        %s157 = scalar_lea.vmem %s1, %s156
        %s158 = sadd.s32 %s16, %s17
      $region24: #{dice_loss.1} parent=15 // pred_fallthru
        _
    $region16: #{dice_loss.1} parent=5 // pred_fallthru
      _
    %p159 = scmp.le.s32.totalorder 1, %s8
    %p160 = scmp.lt.s32.totalorder %s8, 3
    %p161 = pnand %p159, %p160
    %p162 = pneg %p161
    // Predicated region
    $region25: #{dice_loss.1} parent=5 // pred_check
      _
    $region26: #{dice_loss.1} parent=5 // pred_check_branch
      %164 = sbr.rel (%p161) target = $region28
    $region27: #{dice_loss.1} parent=5 // pred_region
      %s165 = ssub.s32 %s8, 1
      %s166 = sadd.s32 %s19, %s20
      %p167 = scmp.lt.s32.totalorder %s18, 1
      %s168 = scalar_select %p167, %s18, 1
      %p169 = scmp.lt.s32.totalorder %s166, 0
      %s170 = scalar_select %p169, %s166, 0
      %s171 = smul.addr %s168, 4
      %s172 = sadd.s32 %s170, %s171
      %s173 = smul.addr %s172, 2
      %s174 = scalar_lea.vmem %s0, %s173
      %p175 = pneg %p57
      %p176 = pneg %p54
      %s177 = sadd.s32 %s19, %s20
      %p178 = scmp.lt.s32.totalorder %s18, 1
      %s179 = scalar_select %p178, %s18, 1
      %p180 = scmp.lt.s32.totalorder %s177, 0
      %s181 = scalar_select %p180, %s177, 0
      %s182 = sadd.s32 %s181, %s179
      %s183 = smul.addr %s182, 2
      %s184 = scalar_lea.vmem %s1, %s183
      %p185 = pneg %p87
      %p186 = pneg %p84
      %p187 = pneg %p115
      %p188 = pneg %p112
      %p189 = scmp.lt.s32.totalorder %s18, 1
      %s190 = scalar_select %p189, %s18, 1
      %p191 = scmp.lt.s32.totalorder %s19, 0
      %s192 = scalar_select %p191, %s19, 0
      %s193 = sadd.s32 %s192, %s190
      %s194 = smul.addr %s193, 4
      %s195 = scalar_lea.vmem %s2, %s194
      %s196 = sadd.s32 %s19, %s20
      %p197 = scmp.lt.s32.totalorder %s18, 1
      %s198 = scalar_select %p197, %s18, 1
      %p199 = scmp.lt.s32.totalorder %s196, 0
      %s200 = scalar_select %p199, %s196, 0
      %s201 = smul.addr %s198, 4
      %s202 = sadd.s32 %s200, %s201
      %s203 = smul.addr %s202, 2
      %s204 = scalar_lea.vmem %s0, %s203
      %s205 = sadd.s32 %s19, %s20
      %s206 = sadd.s32 %s19, %s20
      %p207 = scmp.lt.s32.totalorder %s18, 1
      %s208 = scalar_select %p207, %s18, 1
      %p209 = scmp.lt.s32.totalorder %s206, 0
      %s210 = scalar_select %p209, %s206, 0
      %s211 = sadd.s32 %s210, %s208
      %s212 = smul.addr %s211, 2
      %s213 = scalar_lea.vmem %s1, %s212
      %s214 = sadd.s32 %s19, %s20
      %p215 = scmp.lt.s32.totalorder %s18, 1
      %s216 = scalar_select %p215, %s18, 1
      %p217 = scmp.lt.s32.totalorder %s19, 0
      %s218 = scalar_select %p217, %s19, 0
      %s219 = sadd.s32 %s218, %s216
      %s220 = smul.addr %s219, 4
      %s221 = scalar_lea.vmem %s2, %s220
      %p222 = scmp.eq.s32.totalorder %s20, 0
      // Predicated region
      $region29: #{dice_loss.1} parent=27 // pred_check
        %p223 = pneg %p222
      $region30: #{dice_loss.1} parent=27 // pred_check_branch
        %225 = sbr.rel (%p223) target = $region32
      $region31: #{dice_loss.1} parent=27 // pred_region
        %226 = vst [vmem:[#allocation2] sm:$0xf] 0.0
        %227 = vst [vmem:[#allocation3] sm:$0xf] 0.0
        %228 = vst [vmem:[#allocation4] sm:$0xf] 0.0
      $region32: #{dice_loss.1} parent=27 // pred_fallthru
        _
      %v229 = vld [vmem:[%s204] sm:$0x3]
      %v230 = vld [vmem:[%s204 + $0x2] sm:$0x3]
      %v231 = vld [vmem:[%s204 + $0x4] sm:$0x3]
      %v232 = vld [vmem:[%s204 + $0x6] sm:$0x3]
      %v233 = vld [vmem:[%s213] sm:$0x3]
      %v234 = vcvt.f32.s32.to.zero.pseudo %v233
      %vm235 = vcmask 1041408
      %v236 = vsel %vm235, %v229, -inf
      %v237 = vsel %vm235, %v230, -inf
      %v238 = vsel %vm235, %v231, -inf
      %v239 = vsel %vm235, %v232, -inf
      %v240 = vmax.f32 %v236, %v237
      %v241 = vmax.f32 %v238, %v239
      %v242 = vmax.f32 %v240, %v241
      %v243 = vsub.f32 %v229, %v242
      %v244 = vsub.f32 %v230, %v242
      %v245 = vsub.f32 %v231, %v242
      %v246 = vsub.f32 %v232, %v242
      %v247 = vmul.f32 %v243, 1.442695
      %v248 = vpow.pop %v247
      %v249 = vmul.f32 %v244, 1.442695
      %v250 = vpow.pop %v249
      %v251 = vmul.f32 %v245, 1.442695
      %v252 = vpow.pop %v251
      %v253 = vmul.f32 %v246, 1.442695
      %v254 = vpow.pop %v253
      %v255 = vsel %vm235, %v248, 0.0
      %v256 = vsel %vm235, %v250, 0.0
      %v257 = vadd.f32 %v255, %v256
      %v258 = vsel %vm235, %v252, 0.0
      %v259 = vadd.f32 %v257, %v258
      %v260 = vsel %vm235, %v254, 0.0
      %v261 = vadd.f32 %v259, %v260
      %v262 = vrcp.pop %v261
      %v263 = vmul.f32 %v261, %v262
      %v264 = vsub.f32 1.0, %v263
      %v265 = vmul.f32 %v262, %v264
      %v266 = vadd.f32 %v262, %v265
      %vm267 = vweird.f32 %v261
      %vm268 = vweird.f32 %v262
      %vm269 = vmor %vm267, %vm268
      %v270 = vsel %vm269, %v262, %v266
      %v271 = vand.u32 2147483647, %v261
      %vm272 = vcmp.eq.f32.partialorder %v271, 8.507059e+37
      %v273 = vand.u32 %v261, 2147483648
      %v274 = vor.u32 1.1754944e-38, %v273
      %v275 = vsel %vm272, %v274, %v270
      %v276 = vmul.f32 %v248, %v275
      %v277 = vmul.f32 %v250, %v275
      %v278 = vmul.f32 %v252, %v275
      %v279 = vmul.f32 %v254, %v275
      %vm280 = vcmp.eq.s32.totalorder %v234, 0
      %vm281 = vcmp.eq.s32.totalorder %v234, 1
      %vm282 = vcmp.eq.s32.totalorder %v234, 2
      %vm283 = vcmp.eq.s32.totalorder %v234, 3
      %v284 = vsel %vm280, 1, 0
      %v285 = vsel %vm281, 1, 0
      %v286 = vsel %vm282, 1, 0
      %v287 = vsel %vm283, 1, 0
      %v288 = vcvt.s32.f32 %v284
      %v289 = vcvt.s32.f32 %v285
      %v290 = vcvt.s32.f32 %v286
      %v291 = vcvt.s32.f32 %v287
      %v292 = vld [vmem:[#allocation2] sm:$0xf]
      %v293 = vmul.f32 %v276, %v288
      %v294 = vmul.f32 %v277, %v289
      %v295 = vmul.f32 %v278, %v290
      %v296 = vmul.f32 %v279, %v291
      %v297 = vsel %vm235, %v293, 0.0
      %v298 = vrot.slane %v297, 4
      %v299 = vadd.f32 %v297, %v298
      %v300 = vrot.slane %v299, 2
      %v301 = vadd.f32 %v299, %v300
      %v302 = vrot.slane %v301, 1
      %v303 = vadd.f32 %v301, %v302
      %v304 = vsel %vm235, %v294, 0.0
      %v305 = vrot.slane %v304, 4
      %v306 = vadd.f32 %v304, %v305
      %v307 = vrot.slane %v306, 2
      %v308 = vadd.f32 %v306, %v307
      %v309 = vrot.slane %v308, 1
      %v310 = vadd.f32 %v308, %v309
      %v311 = vsel %vm235, %v295, 0.0
      %v312 = vrot.slane %v311, 4
      %v313 = vadd.f32 %v311, %v312
      %v314 = vrot.slane %v313, 2
      %v315 = vadd.f32 %v313, %v314
      %v316 = vrot.slane %v315, 1
      %v317 = vadd.f32 %v315, %v316
      %v318 = vsel %vm235, %v296, 0.0
      %v319 = vrot.slane %v318, 4
      %v320 = vadd.f32 %v318, %v319
      %v321 = vrot.slane %v320, 2
      %v322 = vadd.f32 %v320, %v321
      %v323 = vrot.slane %v322, 1
      %v324 = vadd.f32 %v322, %v323
      %vm329 = vcmask 1041409
      %v330 = vsel %vm329, %v310, %v303
      %vm331 = vcmask 1042434
      %v332 = vsel %vm331, %v317, %v330
      %vm333 = vcmask 1043459
      %v334 = vsel %vm333, %v324, %v332
      %v336 = vadd.f32 %v292, %v334
      %337 = vst [vmem:[#allocation2] sm:$0xf] %v336
      %v338 = vld [vmem:[#allocation3] sm:$0xf]
      %v339 = vsel %vm235, %v288, 0.0
      %v340 = vrot.slane %v339, 4
      %v341 = vadd.f32 %v339, %v340
      %v342 = vrot.slane %v341, 2
      %v343 = vadd.f32 %v341, %v342
      %v344 = vrot.slane %v343, 1
      %v345 = vadd.f32 %v343, %v344
      %v346 = vsel %vm235, %v289, 0.0
      %v347 = vrot.slane %v346, 4
      %v348 = vadd.f32 %v346, %v347
      %v349 = vrot.slane %v348, 2
      %v350 = vadd.f32 %v348, %v349
      %v351 = vrot.slane %v350, 1
      %v352 = vadd.f32 %v350, %v351
      %v353 = vsel %vm235, %v290, 0.0
      %v354 = vrot.slane %v353, 4
      %v355 = vadd.f32 %v353, %v354
      %v356 = vrot.slane %v355, 2
      %v357 = vadd.f32 %v355, %v356
      %v358 = vrot.slane %v357, 1
      %v359 = vadd.f32 %v357, %v358
      %v360 = vsel %vm235, %v291, 0.0
      %v361 = vrot.slane %v360, 4
      %v362 = vadd.f32 %v360, %v361
      %v363 = vrot.slane %v362, 2
      %v364 = vadd.f32 %v362, %v363
      %v365 = vrot.slane %v364, 1
      %v366 = vadd.f32 %v364, %v365
      %v371 = vsel %vm329, %v352, %v345
      %v372 = vsel %vm331, %v359, %v371
      %v373 = vsel %vm333, %v366, %v372
      %v375 = vadd.f32 %v338, %v373
      %376 = vst [vmem:[#allocation3] sm:$0xf] %v375
      %v377 = vld [vmem:[#allocation4] sm:$0xf]
      %v378 = vmul.f32 %v276, %v276
      %v379 = vmul.f32 %v277, %v277
      %v380 = vmul.f32 %v278, %v278
      %v381 = vmul.f32 %v279, %v279
      %v382 = vsel %vm235, %v378, 0.0
      %v383 = vrot.slane %v382, 4
      %v384 = vadd.f32 %v382, %v383
      %v385 = vrot.slane %v384, 2
      %v386 = vadd.f32 %v384, %v385
      %v387 = vrot.slane %v386, 1
      %v388 = vadd.f32 %v386, %v387
      %v389 = vsel %vm235, %v379, 0.0
      %v390 = vrot.slane %v389, 4
      %v391 = vadd.f32 %v389, %v390
      %v392 = vrot.slane %v391, 2
      %v393 = vadd.f32 %v391, %v392
      %v394 = vrot.slane %v393, 1
      %v395 = vadd.f32 %v393, %v394
      %v396 = vsel %vm235, %v380, 0.0
      %v397 = vrot.slane %v396, 4
      %v398 = vadd.f32 %v396, %v397
      %v399 = vrot.slane %v398, 2
      %v400 = vadd.f32 %v398, %v399
      %v401 = vrot.slane %v400, 1
      %v402 = vadd.f32 %v400, %v401
      %v403 = vsel %vm235, %v381, 0.0
      %v404 = vrot.slane %v403, 4
      %v405 = vadd.f32 %v403, %v404
      %v406 = vrot.slane %v405, 2
      %v407 = vadd.f32 %v405, %v406
      %v408 = vrot.slane %v407, 1
      %v409 = vadd.f32 %v407, %v408
      %v414 = vsel %vm329, %v395, %v388
      %v415 = vsel %vm331, %v402, %v414
      %v416 = vsel %vm333, %v409, %v415
      %v418 = vadd.f32 %v377, %v416
      %419 = vst [vmem:[#allocation4] sm:$0xf] %v418
      // Predicated region
      $region33: #{dice_loss.1} parent=27 // pred_check
        %p420 = pneg %p222
      $region34: #{dice_loss.1} parent=27 // pred_check_branch
        %422 = sbr.rel (%p420) target = $region36
      $region35: #{dice_loss.1} parent=27 // pred_region
        %v423 = vld [vmem:[#allocation2] sm:$0xf]
        %vm424 = vcmask 1043456
        %v425 = vsel %vm424, %v423, 0.0
        %426 = vadd.xlane.f32.xlu0 %v425
        %v427 = vpop.xlane.xlu0 %426
        %vm428 = vcmask 3072
        %429 = vst.msk [vmem:[%s221] sm:$0xf] %vm428, %v427
        %v430 = vld [vmem:[#allocation3] sm:$0xf]
        %v431 = vsel %vm424, %v430, 0.0
        %432 = vadd.xlane.f32.xlu0 %v431
        %v433 = vpop.xlane.xlu0 %432
        %vm434 = vcmask 11272
        %435 = vst.msk [vmem:[%s221] sm:$0xf] %vm434, %v433
        %v436 = vld [vmem:[#allocation4] sm:$0xf]
        %v437 = vsel %vm424, %v436, 0.0
        %438 = vadd.xlane.f32.xlu0 %v437
        %v439 = vpop.xlane.xlu0 %438
        %vm440 = vcmask 19472
        %441 = vst.msk [vmem:[%s221] sm:$0xf] %vm440, %v439
      $region36: #{dice_loss.1} parent=27 // pred_fallthru
        _
      %p442 = scmp.lt.s32.totalorder %s18, 1
      %s443 = scalar_select %p442, %s18, 1
      %p444 = scmp.lt.s32.totalorder %s19, 0
      %s445 = scalar_select %p444, %s19, 0
      %s446 = sadd.s32 %s445, %s443
      %s447 = smul.addr %s446, 4
      %s448 = scalar_lea.vmem %s2, %s447
      // Predicated region
      $region37: #{dice_loss.1} parent=27 // pred_check
        %p449 = pneg %p112
      $region38: #{dice_loss.1} parent=27 // pred_check_branch
        %451 = sbr.rel (%p449) target = $region40
      $region39: #{dice_loss.1} parent=27 // pred_region
        _
      $region40: #{dice_loss.1} parent=27 // pred_fallthru
        _
    $region28: #{dice_loss.1} parent=5 // pred_fallthru
      _
    %p452 = scmp.le.s32.totalorder 2, %s8
    // Predicated region
    $region41: #{dice_loss.1} parent=5 // pred_check
      %p453 = pneg %p452
    $region42: #{dice_loss.1} parent=5 // pred_check_branch
      %455 = sbr.rel (%p453) target = $region44
    $region43: #{dice_loss.1} parent=5 // pred_region
      %s456 = ssub.s32 %s8, 2
      // Predicated region
      $region45: #{dice_loss.1} parent=43 // pred_check
        %p457 = pneg %p118
      $region46: #{dice_loss.1} parent=43 // pred_check_branch
        %459 = sbr.rel (%p457) target = $region48
      $region47: #{dice_loss.1} parent=43 // pred_region
        %p460 = scmp.lt.s32.totalorder %s21, 1
        %s461 = scalar_select %p460, %s21, 1
        %p462 = scmp.lt.s32.totalorder %s22, 0
        %s463 = scalar_select %p462, %s22, 0
        %s464 = sadd.s32 %s463, %s461
        %s465 = smul.addr %s464, 4
        %s466 = scalar_lea.vmem %s2, %s465
      $region48: #{dice_loss.1} parent=43 // pred_fallthru
        _
    $region44: #{dice_loss.1} parent=5 // pred_fallthru
      _
  $region6: #{dice_loss.1} parent=0 // loop_footer
    %s12 = sadd.s32 1, %s8
  $region7: #{dice_loss.1} parent=0 // loop_footer_branch
    %7 = sbr.rel target = $region3
  $region8: #{dice_loss.1} parent=0 // loop_exit
    _

</llo_original>
